<compile_context>
chip_gen: v5e
topology: v5e:2x2
jax: 0.10.0
libtpu: 0.0.40
codegen_flags: <defaults>
</compile_context>

<pallas_src>
import functools
from typing import Tuple, Union

import numpy as np
import jax
import jax.numpy as jnp
from jax import lax
from jax.experimental import pallas as pl
from jax.experimental.pallas import tpu as pltpu


def _interp_matrix(out_size: int, in_size: int) -> jnp.ndarray:
    """(out_size, in_size) bilinear interpolation matrix, align_corners=False."""
    scale = in_size / out_size
    dst = jnp.arange(out_size, dtype=jnp.float32)
    src = (dst + 0.5) * scale - 0.5
    src = jnp.maximum(src, 0.0)                      # PyTorch clamps negatives to 0
    i0 = jnp.floor(src).astype(jnp.int32)
    i0 = jnp.minimum(i0, in_size - 1)
    i1 = jnp.minimum(i0 + 1, in_size - 1)
    w1 = src - i0.astype(jnp.float32)
    w0 = 1.0 - w1
    m0 = jax.nn.one_hot(i0, in_size, dtype=jnp.float32) * w0[:, None]
    m1 = jax.nn.one_hot(i1, in_size, dtype=jnp.float32) * w1[:, None]
    return m0 + m1


def _ceil_to(v: int, m: int) -> int:
    return -(-v // m) * m


def _tile_bytes(rows: int, cols: int, itemsize: int) -> int:
    """VMEM footprint of a (rows, cols) tile padded to the vreg tiling."""
    sub = 8 * max(1, 4 // itemsize)
    return _ceil_to(rows, sub) * _ceil_to(cols, 128) * itemsize


def _vmem_limit_bytes() -> int:
    """Conservative scoped-VMEM request: half of physical, capped at 64 MiB."""
    cap = 64 * 1024 * 1024                           # conservative default (v7x)
    try:
        info = pltpu.get_tpu_info()
        cap = int(getattr(info, "vmem_capacity_bytes", cap)) or cap
    except Exception:
        pass
    return int(min(max(cap // 2, 32 * 1024 * 1024), 64 * 1024 * 1024))


def _pick_block(nc, h_in, w_in, h_out, w_out, in_isz, out_isz, comp_isz,
                vmem_limit) -> int:
    """Planes per grid step.

    The kernel is HBM-bound, so instead of filling VMEM we target ~6 MiB of
    input+output HBM traffic per step and keep >= 16 grid steps whenever the
    number of planes allows it (pipelining + even work split across the two
    v7x TensorCores).  The result is a divisor of nc, preferring an even
    number of steps.
    """
    per_plane_io = h_in * w_in * in_isz + h_out * w_out * out_isz
    per_plane_vmem = (2 * _tile_bytes(h_in, w_in, in_isz)        # double-buffered input
                      + 2 * _tile_bytes(h_out, w_out, out_isz))  # double-buffered output
    # Weight tiles (pipeline keeps 2 buffers each) + generous per-plane
    # temporaries (dtype-cast input, intermediate, f32 result) + compiler slack.
    fixed = (2 * (_tile_bytes(h_out, h_in, comp_isz) + _tile_bytes(w_in, w_out, comp_isz))
             + _tile_bytes(h_in, w_in, 4) + _tile_bytes(h_out, w_in, 4)
             + _tile_bytes(h_in, w_out, 4) + _tile_bytes(h_out, w_out, 4)
             + (2 << 20))
    budget = vmem_limit // 2                          # spend only half the request
    b_io = max(1, (6 << 20) // max(1, per_plane_io))
    b_vm = max(1, (budget - fixed) // max(1, per_plane_vmem)) if budget > fixed else 1
    b_max = int(max(1, min(b_io, b_vm, nc)))
    # Keep >= 16 grid steps when there are enough planes (DMA overlap + megacore).
    b_max = min(b_max, max(1, nc // min(16, nc)))
    divs = [d for d in range(1, b_max + 1) if nc % d == 0]
    even = [d for d in divs if (nc // d) % 2 == 0]    # even step count → clean 2-TC split
    return max(even) if even else max(divs)


def _make_resize_kernel(b, w_first, compute_dtype):
    f32 = jnp.float32

    def one_plane(x_i, wh, wwt):
        # x_i: (h_in, w_in) native dtype; convert in-kernel (hidden under DMA).
        x_i = x_i.astype(compute_dtype)
        if w_first:
            t = jnp.dot(x_i, wwt, preferred_element_type=f32).astype(compute_dtype)
            return jnp.dot(wh, t, preferred_element_type=f32)     # (h_out, w_out) f32
        t = jnp.dot(wh, x_i, preferred_element_type=f32).astype(compute_dtype)
        return jnp.dot(t, wwt, preferred_element_type=f32)        # (h_out, w_out) f32

    def kernel(x_ref, wh_ref, wwt_ref, o_ref):
        wh = wh_ref[...]                                          # (h_out, h_in)
        wwt = wwt_ref[...]                                        # (w_in, w_out)
        if b <= 8:
            # Small block: fully static per-plane loop (no dynamic indexing at all).
            for i in range(b):
                o_ref[i] = one_plane(x_ref[i], wh, wwt).astype(o_ref.dtype)
        else:
            def body(i, carry):
                o_ref[i] = one_plane(x_ref[i], wh, wwt).astype(o_ref.dtype)
                return carry
            lax.fori_loop(0, b, body, 0)

    return kernel


@functools.partial(jax.jit, static_argnums=(1, 2))
def _resize_pallas_hw(x_flat, h_out: int, w_out: int):
    nc, h_in, w_in = x_flat.shape
    in_dtype = x_flat.dtype

    # dtype policy: bf16 stays bf16 end-to-end; f32 stays f32 (accuracy first,
    # kernel is memory-bound); other floats compute in f32 and cast back; integer
    # inputs (which torch's bilinear interpolate rejects anyway) produce f32.
    if in_dtype == jnp.bfloat16:
        compute_dtype, out_dtype = jnp.bfloat16, jnp.bfloat16
    elif in_dtype == jnp.float32:
        compute_dtype, out_dtype = jnp.float32, jnp.float32
    elif jnp.issubdtype(in_dtype, jnp.floating):
        compute_dtype, out_dtype = jnp.float32, in_dtype
    else:
        compute_dtype, out_dtype = jnp.float32, jnp.float32

    in_isz = np.dtype(in_dtype).itemsize
    out_isz = np.dtype(out_dtype).itemsize
    comp_isz = np.dtype(compute_dtype).itemsize

    # Resize-order choice with lane/sublane-padded matmul costs (the MXU really
    # operates on 128-lane / 8|16-sublane padded tiles, so raw MACs mislead for
    # narrow dims).
    sub_c = 8 * max(1, 4 // comp_isz)
    cost_w_first = (_ceil_to(h_in, sub_c) * _ceil_to(w_in, 128) * _ceil_to(w_out, 128)
                    + _ceil_to(h_out, sub_c) * _ceil_to(h_in, 128) * _ceil_to(w_out, 128))
    cost_h_first = (_ceil_to(h_out, sub_c) * _ceil_to(h_in, 128) * _ceil_to(w_in, 128)
                    + _ceil_to(h_out, sub_c) * _ceil_to(w_in, 128) * _ceil_to(w_out, 128))
    w_first = cost_w_first <= cost_h_first

    vmem_limit = _vmem_limit_bytes()
    b = _pick_block(nc, h_in, w_in, h_out, w_out, in_isz, out_isz, comp_isz, vmem_limit)
    num_blocks = nc // b

    wh = _interp_matrix(h_out, h_in).astype(compute_dtype)        # (h_out, h_in)
    wwt = _interp_matrix(w_out, w_in).T.astype(compute_dtype)     # (w_in, w_out), pre-transposed

    kernel = _make_resize_kernel(b, w_first, compute_dtype)

    return pl.pallas_call(
        kernel,
        out_shape=jax.ShapeDtypeStruct((nc, h_out, w_out), out_dtype),
        grid_spec=pltpu.PrefetchScalarGridSpec(
            num_scalar_prefetch=0,
            grid=(num_blocks,),
            in_specs=[
                pl.BlockSpec((b, h_in, w_in), lambda i: (i, 0, 0)),
                # Constant index maps: Pallas keeps these weight blocks resident
                # and does not re-issue their DMAs across grid steps.
                pl.BlockSpec((h_out, h_in), lambda i: (0, 0)),
                pl.BlockSpec((w_in, w_out), lambda i: (0, 0)),
            ],
            out_specs=pl.BlockSpec((b, h_out, w_out), lambda i: (i, 0, 0)),
        ),
        compiler_params=pltpu.CompilerParams(
            dimension_semantics=("parallel",),
            vmem_limit_bytes=vmem_limit,
        ),
    )(x_flat, wh, wwt)


def resize_pallas(x: jnp.ndarray,
                  size: Union[int, Tuple[int, int]],
                  interpolation: str = "bilinear") -> jnp.ndarray:
    """JAX/Pallas equivalent of the PyTorch `resize` function (NCHW input)."""
    if interpolation != "bilinear":
        # TODO(synk): only 'bilinear' interpolation is implemented in the kernel.
        raise NotImplementedError("only bilinear interpolation is supported")
    if x.ndim != 4:
        raise ValueError("expected a 4-D NCHW tensor")

    if isinstance(size, int):
        # Mirror the (quirky) PyTorch reference logic exactly, including its
        # naming of shape[-2:] as (w, h); the double swap cancels so the smaller
        # edge ends up matched to `size` just like torchvision/kornia.
        w, h = x.shape[-2:]
        if (w <= h and w == size) or (h <= w and h == size):
            return x
        if w < h:
            ow = size
            oh = int(size * h / w)
        else:
            oh = size
            ow = int(size * w / h)
        new_size = (ow, oh)
    else:
        new_size = tuple(size)

    h_out, w_out = int(new_size[0]), int(new_size[1])
    n, c, h_in, w_in = x.shape
    x_flat = x.reshape(n * c, h_in, w_in)
    out_flat = _resize_pallas_hw(x_flat, h_out, w_out)
    return out_flat.reshape(n, c, h_out, w_out)


if __name__ == "__main__":
    def reference_resize(x, h_out, w_out):
        wh = _interp_matrix(h_out, x.shape[-2])
        ww = _interp_matrix(w_out, x.shape[-1])
        return jnp.einsum("oh,nchw,pw->ncop", wh, x.astype(jnp.float32), ww)

    key = jax.random.PRNGKey(0)
    k1, k2, k3 = jax.random.split(key, 3)

    # 1) tuple-size path: square f32 input, down-sample to a non-square size.
    x1 = jax.random.normal(k1, (2, 4, 16, 16), dtype=jnp.float32)
    out1 = resize_pallas(x1, (8, 12), interpolation="bilinear")
    jax.block_until_ready(out1)
    assert out1.shape == (2, 4, 8, 12), out1.shape
    np.testing.assert_allclose(np.asarray(out1),
                               np.asarray(reference_resize(x1, 8, 12)),
                               rtol=2e-2, atol=2e-2)

    # 2) int-size path (square input, smaller edge -> 24, non-integer upsample).
    out2 = resize_pallas(x1, 24)
    jax.block_until_ready(out2)
    assert out2.shape == (2, 4, 24, 24), out2.shape
    np.testing.assert_allclose(np.asarray(out2),
                               np.asarray(reference_resize(x1, 24, 24)),
                               rtol=2e-2, atol=2e-2)

    # 3) non-square bf16 input, H up-sampled / W down-sampled (bf16 stays bf16).
    x2 = jax.random.normal(k2, (2, 3, 16, 24), dtype=jnp.bfloat16)
    out3 = resize_pallas(x2, (32, 10))
    jax.block_until_ready(out3)
    assert out3.shape == (2, 3, 32, 10), out3.shape
    assert out3.dtype == jnp.bfloat16, out3.dtype
    np.testing.assert_allclose(np.asarray(out3.astype(jnp.float32)),
                               np.asarray(reference_resize(x2, 32, 10)),
                               rtol=5e-2, atol=5e-2)

    # 4) H dims not multiples of 8 (unaligned sublane dims, H-first order).
    x3 = jax.random.normal(k3, (2, 2, 12, 20), dtype=jnp.float32)
    out4 = resize_pallas(x3, (10, 28))
    jax.block_until_ready(out4)
    assert out4.shape == (2, 2, 10, 28), out4.shape
    np.testing.assert_allclose(np.asarray(out4),
                               np.asarray(reference_resize(x3, 10, 28)),
                               rtol=2e-2, atol=2e-2)

    # 5) NON-SQUARE int-size path: H=16 < W=24, size=8 -> (8, 12) output
    #    (guards the swapped (w, h) naming in the int-size branch).
    out5 = resize_pallas(x2, 8)
    jax.block_until_ready(out5)
    assert out5.shape == (2, 3, 8, 12), out5.shape
    np.testing.assert_allclose(np.asarray(out5.astype(jnp.float32)),
                               np.asarray(reference_resize(x2, 8, 12)),
                               rtol=5e-2, atol=5e-2)

    # 6) int-size identity branch: smaller edge already equals size -> input returned.
    out6 = resize_pallas(x2, 16)
    assert out6 is x2 and out6.shape == x2.shape

    print("KERNEL_OK")
</pallas_src>

<mosaic_0001>
module attributes {stable_mosaic.version = 11 : i64} {
  func.func @kernel(%arg0: i32, %arg1: memref<1x16x16xf32, #tpu.memory_space<vmem>>, %arg2: memref<8x16xf32, #tpu.memory_space<vmem>>, %arg3: memref<16x12xf32, #tpu.memory_space<vmem>>, %arg4: memref<1x8x12xf32, #tpu.memory_space<vmem>>) attributes {dimension_semantics = [#tpu.dimension_semantics<parallel>], iteration_bounds = array<i64: 8>, scalar_prefetch = 0 : i64, scratch_operands = 0 : i64, tpu.core_type = #tpu.core_type<tc>, window_params = [{transform_indices = @transform_0, window_bounds = array<i64: 1, 16, 16>}, {pipeline_mode = #tpu.pipeline_mode<synchronous>, transform_indices = @transform_1, window_bounds = array<i64: 8, 16>}, {pipeline_mode = #tpu.pipeline_mode<synchronous>, transform_indices = @transform_2, window_bounds = array<i64: 16, 12>}, {transform_indices = @transform_3, window_bounds = array<i64: 1, 8, 12>}]} {
    %c0 = arith.constant 0 : index
    %c0_0 = arith.constant 0 : index
    %0 = vector.load %arg2[%c0, %c0_0] : memref<8x16xf32, #tpu.memory_space<vmem>>, vector<8x16xf32>
    %c0_1 = arith.constant 0 : index
    %c0_2 = arith.constant 0 : index
    %1 = vector.load %arg3[%c0_1, %c0_2] : memref<16x12xf32, #tpu.memory_space<vmem>>, vector<16x12xf32>
    %c0_3 = arith.constant 0 : index
    %c0_4 = arith.constant 0 : index
    %c0_5 = arith.constant 0 : index
    %2 = vector.load %arg1[%c0_3, %c0_4, %c0_5] : memref<1x16x16xf32, #tpu.memory_space<vmem>>, vector<1x16x16xf32>
    %3 = vector.shape_cast %2 : vector<1x16x16xf32> to vector<16x16xf32>
    %cst = arith.constant dense<0.000000e+00> : vector<8x16xf32>
    %4 = tpu.matmul %0, %3, %cst {dimension_numbers = #tpu.dot_dimension_numbers<[1], [0], [0], [1], [0, 0, 1, 1], [], []>} : vector<8x16xf32>, vector<16x16xf32>, vector<8x16xf32> -> vector<8x16xf32>
    %cst_6 = arith.constant dense<0.000000e+00> : vector<8x12xf32>
    %5 = tpu.matmul %4, %1, %cst_6 {dimension_numbers = #tpu.dot_dimension_numbers<[1], [0], [0], [1], [0, 0, 1, 1], [], []>} : vector<8x16xf32>, vector<16x12xf32>, vector<8x12xf32> -> vector<8x12xf32>
    %c0_7 = arith.constant 0 : index
    %c0_8 = arith.constant 0 : index
    %c0_9 = arith.constant 0 : index
    %6 = vector.load %arg4[%c0_7, %c0_8, %c0_9] : memref<1x8x12xf32, #tpu.memory_space<vmem>>, vector<1x8x12xf32>
    %7 = vector.shape_cast %6 : vector<1x8x12xf32> to vector<8x12xf32>
    %8 = vector.shape_cast %5 : vector<8x12xf32> to vector<1x8x12xf32>
    tpu.vector_store %arg4[%c0_7, %c0_8, %c0_9], %8 {strides = array<i32>} : memref<1x8x12xf32, #tpu.memory_space<vmem>>, vector<1x8x12xf32>,
    return
  }
  func.func @transform_0(%arg0: i32) -> (i32, i32, i32) {
    %c0_i32 = arith.constant 0 : i32
    %c0_i32_0 = arith.constant 0 : i32
    %c0_i32_1 = arith.constant 0 : i32
    return %arg0, %c0_i32, %c0_i32_0 : i32, i32, i32
  }
  func.func @transform_1(%arg0: i32) -> (i32, i32) {
    %c0_i32 = arith.constant 0 : i32
    %c0_i32_0 = arith.constant 0 : i32
    %c0_i32_1 = arith.constant 0 : i32
    return %c0_i32, %c0_i32_0 : i32, i32
  }
  func.func @transform_2(%arg0: i32) -> (i32, i32) {
    %c0_i32 = arith.constant 0 : i32
    %c0_i32_0 = arith.constant 0 : i32
    %c0_i32_1 = arith.constant 0 : i32
    return %c0_i32, %c0_i32_0 : i32, i32
  }
  func.func @transform_3(%arg0: i32) -> (i32, i32, i32) {
    %c0_i32 = arith.constant 0 : i32
    %c0_i32_0 = arith.constant 0 : i32
    %c0_i32_1 = arith.constant 0 : i32
    return %arg0, %c0_i32, %c0_i32_0 : i32, i32, i32
  }
}

</mosaic_0001>

<llo_original>
// kernel: _resize_pallas_hw.1
$region0: #{_resize_pallas_hw.1}
  #allocation0 [shape = 'u32[]', space=smem, size = 0x4, offset = 0x4, fixed_abs, tag = 'smem constant byte address 0x4 - core index']
  #allocation1 [shape = 'u32[72,128]{1,0:T(1,128)}', space=vmem, size = 0x9000, scoped, tag = 'internal scratch']
  %s0 = inlined_call_operand.hbm [shape: f32[8,16,16], index: 0, kind: input, shape index: {}]
  %s1 = inlined_call_operand.vmem [shape: f32[8,16], index: 1, kind: input, shape index: {}]
  %s2 = inlined_call_operand.vmem [shape: f32[16,12], index: 2, kind: input, shape index: {}]
  %s3 = inlined_call_operand.hbm [shape: f32[8,8,12], index: 3, kind: output, shape index: {}]
  %s4 = sld [smem:[#allocation0]]
  $region49: #{_resize_pallas_hw.1} parent=0
    _
  %s6 = ssub.s32 1, %s4
  %s7 = scalar_select 0, %s6, %s4
  $region1: #{_resize_pallas_hw.1} parent=0
    #allocation2 [shape = 'u8[16384]{0}', space=vmem, size = 0x4000, scoped, tag = 'input window, operand 0']
    #allocation3 [shape = 's32[2]{0}', space=sflag, size = 0x8, scoped, tag = 'scoped memory for _resize_pallas_hw.1']
    #allocation4 [shape = 's32[2]{0}', space=sflag, size = 0x8, scoped, tag = 'scoped memory for _resize_pallas_hw.1']
    #allocation5 [shape = 'u8[8192]{0}', space=vmem, size = 0x2000, scoped, tag = 'output window, operand 0']
    %8 = vsyncpa [#allocation3], 0
    %s9 = scalar_lea.sflag [#allocation3], 1
    %10 = vsyncpa %s9, 0
    %11 = vsyncpa [#allocation4], 0
    %s12 = scalar_lea.sflag [#allocation4], 1
    %13 = vsyncpa %s12, 0
    loop: start=0, step=1, limit=10
    $region2: #{_resize_pallas_hw.1} parent=1 // loop_pre_header
      _
    $region3: #{_resize_pallas_hw.1} parent=1 // loop_header
      %s15 = sphi 0, %s19
      %p16 = scmp.ge.s32.totalorder %s15, 10
      %s25 = sphi 0, %s27
      %s28 = sphi 0, %s25
      %s29 = sphi 0, %s28
      %s45 = sphi 0, %s29
      %s49 = sphi 0, %s49
      %s51 = sphi 0, %s49
      %s52 = sphi 0, %s51
      %s66 = sphi 0, %s52
      %s70 = sphi 0, %s70
      %s72 = sphi 0, %s70
      %s73 = sphi 0, %s72
      %s87 = sphi 0, %s73
      %s93 = sphi 0, %s95
      %s96 = sphi 0, %s93
      %s97 = sphi 0, %s96
      %s113 = sphi 0, %s97
    $region4: #{_resize_pallas_hw.1} parent=1 // loop_header_branch
      %18 = sbr.rel (%p16) target = $region8
    $region5: #{_resize_pallas_hw.1} parent=1 // loop_body
      %s20 = ssub.s32 %s15, 1
      %s21 = ssub.s32 %s15, 2
      %s22 = sadd.s32 %s15, 1
      %s23 = ssub.s32 %s15, %s22
      %p24 = scmp.eq.s32.totalorder %s23, 0
      %s26 = sadd.s32 %s25, 1
      %s27 = scalar_select %p24, %s25, %s26
      %p30 = pneg %p24
      %p31 = scmp.eq.s32.totalorder %s15, 7
      %p32 = por %p30, %p31
      %p33 = scmp.ne.s32.totalorder %s25, %s28
      %p34 = scmp.eq.s32.totalorder %s15, 0
      %p35 = por %p33, %p34
      %p36 = scmp.ne.s32.totalorder %s25, %s28
      %p37 = scmp.eq.s32.totalorder %s20, 7
      %p38 = por %p36, %p37
      %p39 = scmp.ne.s32.totalorder %s28, %s29
      %p40 = scmp.eq.s32.totalorder %s20, 0
      %p41 = por %p39, %p40
      %p42 = scmp.ne.s32.totalorder %s28, %s29
      %p43 = scmp.eq.s32.totalorder %s21, 7
      %p44 = por %p42, %p43
      %p46 = scmp.ne.s32.totalorder %s29, %s45
      %p47 = scmp.eq.s32.totalorder %s21, 0
      %p48 = por %p46, %p47
      %s50 = sadd.s32 %s49, 1
      %p53 = scmp.eq.s32.totalorder %s15, 7
      %p54 = scmp.ne.s32.totalorder %s49, %s51
      %p55 = scmp.eq.s32.totalorder %s15, 0
      %p56 = por %p54, %p55
      %p57 = scmp.ne.s32.totalorder %s49, %s51
      %p58 = scmp.eq.s32.totalorder %s20, 7
      %p59 = por %p57, %p58
      %p60 = scmp.ne.s32.totalorder %s51, %s52
      %p61 = scmp.eq.s32.totalorder %s20, 0
      %p62 = por %p60, %p61
      %p63 = scmp.ne.s32.totalorder %s51, %s52
      %p64 = scmp.eq.s32.totalorder %s21, 7
      %p65 = por %p63, %p64
      %p67 = scmp.ne.s32.totalorder %s52, %s66
      %p68 = scmp.eq.s32.totalorder %s21, 0
      %p69 = por %p67, %p68
      %s71 = sadd.s32 %s70, 1
      %p74 = scmp.eq.s32.totalorder %s15, 7
      %p75 = scmp.ne.s32.totalorder %s70, %s72
      %p76 = scmp.eq.s32.totalorder %s15, 0
      %p77 = por %p75, %p76
      %p78 = scmp.ne.s32.totalorder %s70, %s72
      %p79 = scmp.eq.s32.totalorder %s20, 7
      %p80 = por %p78, %p79
      %p81 = scmp.ne.s32.totalorder %s72, %s73
      %p82 = scmp.eq.s32.totalorder %s20, 0
      %p83 = por %p81, %p82
      %p84 = scmp.ne.s32.totalorder %s72, %s73
      %p85 = scmp.eq.s32.totalorder %s21, 7
      %p86 = por %p84, %p85
      %p88 = scmp.ne.s32.totalorder %s73, %s87
      %p89 = scmp.eq.s32.totalorder %s21, 0
      %p90 = por %p88, %p89
      %s91 = ssub.s32 %s15, %s22
      %p92 = scmp.eq.s32.totalorder %s91, 0
      %s94 = sadd.s32 %s93, 1
      %s95 = scalar_select %p92, %s93, %s94
      %p98 = pneg %p92
      %p99 = scmp.eq.s32.totalorder %s15, 7
      %p100 = por %p98, %p99
      %p101 = scmp.ne.s32.totalorder %s93, %s96
      %p102 = scmp.eq.s32.totalorder %s15, 0
      %p103 = por %p101, %p102
      %p104 = scmp.ne.s32.totalorder %s93, %s96
      %p105 = scmp.eq.s32.totalorder %s20, 7
      %p106 = por %p104, %p105
      %p107 = scmp.ne.s32.totalorder %s96, %s97
      %p108 = scmp.eq.s32.totalorder %s20, 0
      %p109 = por %p107, %p108
      %p110 = scmp.ne.s32.totalorder %s96, %s97
      %p111 = scmp.eq.s32.totalorder %s21, 7
      %p112 = por %p110, %p111
      %p114 = scmp.ne.s32.totalorder %s97, %s113
      %p115 = scmp.eq.s32.totalorder %s21, 0
      %p116 = por %p114, %p115
      %p117 = scmp.le.s32.totalorder 1, %s15
      %p118 = scmp.lt.s32.totalorder %s15, 9
      %p119 = pnand %p117, %p118
      %p120 = pneg %p119
      // Predicated region
      $region9: #{_resize_pallas_hw.1} parent=5 // pred_check
        _
      $region10: #{_resize_pallas_hw.1} parent=5 // pred_check_branch
        %122 = sbr.rel (%p119) target = $region12
      $region11: #{_resize_pallas_hw.1} parent=5 // pred_region
        %s123 = ssub.s32 %s15, 1
        // Predicated region
        $region13: #{_resize_pallas_hw.1} parent=11 // pred_check
          %p124 = pneg %p62
        $region14: #{_resize_pallas_hw.1} parent=11 // pred_check_branch
          %126 = sbr.rel (%p124) target = $region16
        $region15: #{_resize_pallas_hw.1} parent=11 // pred_region
          _
        $region16: #{_resize_pallas_hw.1} parent=11 // pred_fallthru
          _
        // Predicated region
        $region17: #{_resize_pallas_hw.1} parent=11 // pred_check
          %p127 = pneg %p83
        $region18: #{_resize_pallas_hw.1} parent=11 // pred_check_branch
          %129 = sbr.rel (%p127) target = $region20
        $region19: #{_resize_pallas_hw.1} parent=11 // pred_region
          _
        $region20: #{_resize_pallas_hw.1} parent=11 // pred_fallthru
          _
      $region12: #{_resize_pallas_hw.1} parent=5 // pred_fallthru
        _
      %p130 = scmp.lt.s32.totalorder %s15, 8
      // Predicated region
      $region21: #{_resize_pallas_hw.1} parent=5 // pred_check
        %p131 = pneg %p130
      $region22: #{_resize_pallas_hw.1} parent=5 // pred_check_branch
        %133 = sbr.rel (%p131) target = $region24
      $region23: #{_resize_pallas_hw.1} parent=5 // pred_region
        // Predicated region
        $region25: #{_resize_pallas_hw.1} parent=23 // pred_check
          %p134 = pneg %p35
        $region26: #{_resize_pallas_hw.1} parent=23 // pred_check_branch
          %136 = sbr.rel (%p134) target = $region28
        $region27: #{_resize_pallas_hw.1} parent=23 // pred_region
          %s137 = sand.u32 %s25, 1
          %s138 = scalar_lea.sflag [#allocation3], %s137
          %s139 = sand.u32 %s25, 1
          %s140 = smul.addr %s139, 16
          %s141 = scalar_lea.vmem [#allocation2], %s140
          %143 = vsyncadd %s138, 0
          %s144 = smul.addr %s15, 2
          %s145 = smul.addr %s144, 8
          %s146 = scalar_lea.hbm %s0, %s145
          %s147 = sshll.u32 %s146, 4
          %s148 = int_to_ptr.hbm [resolvable:$true] %s147
          %s149 = sshll.u32 %s141, 4
          %s150 = int_to_ptr.vmem [resolvable:$true] %s149
          %155 = dma.hbm_to_vmem [thread:$0]  %s148, 256, %s150, %s138, 128, 128, 8
        $region28: #{_resize_pallas_hw.1} parent=23 // pred_fallthru
          _
      $region24: #{_resize_pallas_hw.1} parent=5 // pred_fallthru
        _
      %p156 = scmp.le.s32.totalorder 1, %s15
      %p157 = scmp.lt.s32.totalorder %s15, 9
      %p158 = pnand %p156, %p157
      %p159 = pneg %p158
      // Predicated region
      $region29: #{_resize_pallas_hw.1} parent=5 // pred_check
        _
      $region30: #{_resize_pallas_hw.1} parent=5 // pred_check_branch
        %161 = sbr.rel (%p158) target = $region32
      $region31: #{_resize_pallas_hw.1} parent=5 // pred_region
        %s162 = ssub.s32 %s15, 1
        %s163 = sand.u32 %s28, 1
        %s164 = scalar_lea.sflag [#allocation3], %s163
        %s165 = sand.u32 %s28, 1
        %s166 = smul.addr %s165, 16
        %s167 = scalar_lea.vmem [#allocation2], %s166
        // Predicated region
        $region33: #{_resize_pallas_hw.1} parent=31 // pred_check
          %p168 = pneg %p41
        $region34: #{_resize_pallas_hw.1} parent=31 // pred_check_branch
          %170 = sbr.rel (%p168) target = $region36
        $region35: #{_resize_pallas_hw.1} parent=31 // pred_region
          %172 = dma.done %s164, 256
        $region36: #{_resize_pallas_hw.1} parent=31 // pred_fallthru
          _
        %s173 = sand.u32 %s28, 1
        %s174 = scalar_lea.sflag [#allocation3], %s173
        %s175 = sand.u32 %s28, 1
        %s176 = smul.addr %s175, 16
        %s177 = scalar_lea.vmem [#allocation2], %s176
        %p178 = pneg %p41
        %p179 = pneg %p38
        %p180 = pneg %p62
        %p181 = pneg %p59
        %p182 = pneg %p83
        %p183 = pneg %p80
        %p184 = pneg %p109
        %p185 = pneg %p106
        %s186 = sand.u32 %s96, 1
        %s187 = scalar_lea.sflag [#allocation4], %s186
        %s188 = sand.u32 %s96, 1
        %s189 = smul.addr %s188, 8
        %s190 = scalar_lea.vmem [#allocation5], %s189
        %v191 = vld [vmem:[%s1] sm:$0xff]
        %v192 = vld [vmem:[%s2] sm:$0xff]
        %v193 = vld [vmem:[%s2 + $0x8] sm:$0xff]
        %v194 = vld [vmem:[%s167] sm:$0xff]
        %v195 = vld [vmem:[%s167 + $0x8] sm:$0xff]
        %vm196 = vcmask 130048
        %v198 = vsel %vm196, %v191, 0
        %200 = vmatpush.msra.mxu0 0.0
        %201 = vmatpush.msra.mxu0 0.0
        %202 = vmatpush.msra.mxu0 0.0
        %203 = vmatpush.msra.mxu0 0.0
        %204 = vmatpush.msra.mxu0 0.0
        %205 = vmatpush.msra.mxu0 0.0
        %206 = vmatpush.msra.mxu0 0.0
        %207 = vmatpush.msra.mxu0 0.0
        %208 = vmatpush.msra.mxu0 0.0
        %209 = vmatpush.msra.mxu0 0.0
        %210 = vmatpush.msra.mxu0 0.0
        %211 = vmatpush.msra.mxu0 0.0
        %212 = vmatpush.msra.mxu0 0.0
        %213 = vmatpush.msra.mxu0 0.0
        %214 = vmatpush.msra.mxu0 %v195
        %215 = vmatpush.msra.mxu0 %v194
        %216 = vmatmul.f32.gmra.mxu0 %v198
        %v217 = vpop.f32.mrf.mxu0
        %v218 = vadd.f32 0.0, %v217
        %219 = vdwg.mxu0
        %v221 = vsel %vm196, %v218, 0
        %223 = vmatpush.msra.mxu0 0.0
        %224 = vmatpush.msra.mxu0 0.0
        %225 = vmatpush.msra.mxu0 0.0
        %226 = vmatpush.msra.mxu0 0.0
        %227 = vmatpush.msra.mxu0 0.0
        %228 = vmatpush.msra.mxu0 0.0
        %229 = vmatpush.msra.mxu0 0.0
        %230 = vmatpush.msra.mxu0 0.0
        %231 = vmatpush.msra.mxu0 0.0
        %232 = vmatpush.msra.mxu0 0.0
        %233 = vmatpush.msra.mxu0 0.0
        %234 = vmatpush.msra.mxu0 0.0
        %235 = vmatpush.msra.mxu0 0.0
        %236 = vmatpush.msra.mxu0 0.0
        %237 = vmatpush.msra.mxu0 %v193
        %238 = vmatpush.msra.mxu0 %v192
        %239 = vmatmul.f32.gmra.mxu0 %v221
        %v240 = vpop.f32.mrf.mxu0
        %v241 = vadd.f32 0.0, %v240
        %242 = vdwg.mxu0
        %vm243 = vcmask 97280
        %244 = vst.msk [vmem:[%s190] sm:$0xff] %vm243, %v241
        %s245 = sand.u32 %s96, 1
        %s246 = scalar_lea.sflag [#allocation4], %s245
        %s247 = sand.u32 %s96, 1
        %s248 = smul.addr %s247, 8
        %s249 = scalar_lea.vmem [#allocation5], %s248
        // Predicated region
        $region37: #{_resize_pallas_hw.1} parent=31 // pred_check
          %p250 = pneg %p106
        $region38: #{_resize_pallas_hw.1} parent=31 // pred_check_branch
          %252 = sbr.rel (%p250) target = $region40
        $region39: #{_resize_pallas_hw.1} parent=31 // pred_region
          %254 = vsyncadd %s246, 0
          %s255 = smul.addr %s20, 8
          %s256 = scalar_lea.hbm %s3, %s255
          %s258 = sshll.u32 %s249, 4
          %s259 = int_to_ptr.vmem [resolvable:$true] %s258
          %s260 = sshll.u32 %s256, 4
          %s261 = int_to_ptr.hbm [resolvable:$true] %s260
          %263 = dma.vmem_to_hbm [thread:$0]  %s259, 128, %s261, %s246
        $region40: #{_resize_pallas_hw.1} parent=31 // pred_fallthru
          _
      $region32: #{_resize_pallas_hw.1} parent=5 // pred_fallthru
        _
      %p264 = scmp.le.s32.totalorder 2, %s15
      // Predicated region
      $region41: #{_resize_pallas_hw.1} parent=5 // pred_check
        %p265 = pneg %p264
      $region42: #{_resize_pallas_hw.1} parent=5 // pred_check_branch
        %267 = sbr.rel (%p265) target = $region44
      $region43: #{_resize_pallas_hw.1} parent=5 // pred_region
        %s268 = ssub.s32 %s15, 2
        // Predicated region
        $region45: #{_resize_pallas_hw.1} parent=43 // pred_check
          %p269 = pneg %p112
        $region46: #{_resize_pallas_hw.1} parent=43 // pred_check_branch
          %271 = sbr.rel (%p269) target = $region48
        $region47: #{_resize_pallas_hw.1} parent=43 // pred_region
          %s272 = sand.u32 %s97, 1
          %s273 = scalar_lea.sflag [#allocation4], %s272
          %s274 = sand.u32 %s97, 1
          %s275 = smul.addr %s274, 8
          %s276 = scalar_lea.vmem [#allocation5], %s275
          %278 = dma.done %s273, 128
        $region48: #{_resize_pallas_hw.1} parent=43 // pred_fallthru
          _
      $region44: #{_resize_pallas_hw.1} parent=5 // pred_fallthru
        _
    $region6: #{_resize_pallas_hw.1} parent=1 // loop_footer
      %s19 = sadd.s32 1, %s15
    $region7: #{_resize_pallas_hw.1} parent=1 // loop_footer_branch
      %14 = sbr.rel target = $region3
    $region8: #{_resize_pallas_hw.1} parent=1 // loop_exit
      _
    %279 = vsyncpa [#allocation3], 1
    %s280 = scalar_lea.sflag [#allocation3], 1
    %281 = vsyncpa %s280, 1
    %282 = vsyncpa [#allocation4], 1
    %s283 = scalar_lea.sflag [#allocation4], 1
    %284 = vsyncpa %s283, 1

</llo_original>
